<compile_context>
chip_gen: v5e
topology: v5e:2x2
jax: 0.10.0
libtpu: 0.0.40
codegen_flags: <defaults>
</compile_context>

<pallas_src>
import functools
import math

import jax
import jax.numpy as jnp
from jax.experimental import pallas as pl
from jax.experimental.pallas import tpu as pltpu


def _build_pe_table(max_len: int, n_units: int) -> jnp.ndarray:
    """Deterministic sinusoidal table, identical to the PyTorch __init__ (glue, plain JAX)."""
    position = jnp.arange(0, max_len, dtype=jnp.float32)[:, None]            # (max_len, 1)
    div_term = jnp.exp(
        jnp.arange(0, n_units, 2, dtype=jnp.float32) * -(math.log(10000.0) / n_units)
    )                                                                         # (n_units/2,)
    pe = jnp.zeros((max_len, n_units), dtype=jnp.float32)
    pe = pe.at[:, 0::2].set(jnp.sin(position * div_term))
    pe = pe.at[:, 1::2].set(jnp.cos(position * div_term))
    return pe                                                                 # (max_len, n_units)


def _pe_dropout_kernel(seed_ref, x_ref, pe_ref, o_ref, *,
                       rows_total: int, block_rows: int, cols: int,
                       keep_threshold: int, scale: float,
                       training: bool, batch_inner: bool):
    # x_ref / pe_ref / o_ref are (block_rows, cols) VMEM tiles (batch dim squeezed).
    y = x_ref[...] + pe_ref[...]

    if training and keep_threshold > 0:
        # Stateless counter-based hash dropout: tiling-invariant, platform-independent,
        # keeps both grid axes "parallel".  NOTE: intentionally not bit-identical to
        # torch's RNG stream; only the Bernoulli(1-p) statistics match.
        if batch_inner:                        # grid = (num_row_tiles, B)
            r0 = pl.program_id(0) * block_rows
            b = pl.program_id(1)
        else:                                  # grid = (B,), single row tile
            b = pl.program_id(0)
            r0 = 0
        row = jax.lax.broadcasted_iota(jnp.int32, (block_rows, cols), 0).astype(jnp.uint32)
        col = jax.lax.broadcasted_iota(jnp.int32, (block_rows, cols), 1).astype(jnp.uint32)
        base = (b * rows_total + r0).astype(jnp.uint32)
        gidx = (base + row) * jnp.uint32(cols) + col          # uint32 modular arithmetic
        h = gidx ^ seed_ref[0].astype(jnp.uint32)
        h = (h ^ (h >> 16)) * jnp.uint32(0x7FEB352D)          # single-multiply mix is
        h = h ^ (h >> 15)                                     # plenty for dropout bits
        keep = h >= jnp.uint32(keep_threshold)                # integer-domain keep test
        # Apply the 1/(1-p) scale in f32 so bf16 inputs don't pick up a scale bias.
        y = jnp.where(keep, y.astype(jnp.float32) * jnp.float32(scale), jnp.float32(0.0))

    o_ref[...] = y.astype(o_ref.dtype)


def _generation_tile_config():
    """(per-buffer tile target bytes, vmem_limit_bytes) chosen per TPU generation."""
    try:
        vmem_cap = pltpu.get_tpu_info().vmem_capacity_bytes
    except Exception:
        vmem_cap = None
    if vmem_cap is not None and vmem_cap >= 96 * 1024 * 1024:
        # v5e / v6e: 128 MiB VMEM -> bigger tiles, fewer per-step overheads.
        # 3 arrays x 2 buffers x 6 MiB = 36 MiB, well inside the 64 MiB limit.
        return 6 * 1024 * 1024, 64 * 1024 * 1024
    # v7x (64 MiB per-TC VMEM, both TCs active) or unknown: stay conservative.
    return 3 * 1024 * 1024, 32 * 1024 * 1024


def positional_encoding_forward(x, pe_table, *, p: float = 0.1,
                                training: bool = False, seed: int = 0):
    """x: (B, S, D); pe_table: (max_len, D). Returns dropout(x + pe[:S])."""
    B, S, D = x.shape
    # Pre-cast pe once in the wrapper (halves pe DMA bytes for bf16 inputs).
    pe = pe_table[:S].astype(x.dtype)

    # Present a lane-dense layout (last dim a multiple of 128) to the kernel so
    # every store is a full-lane vst.  Prefer a reshape (free), fall back to padding.
    pad_cols = 0
    if D % 128 == 0:
        R, C = S, D
        x_rc, pe_rc = x, pe
    elif (S * D) % 128 == 0:
        R, C = (S * D) // 128, 128
        x_rc = x.reshape(B, R, C)
        pe_rc = pe.reshape(R, C)
    else:
        Dp = ((D + 127) // 128) * 128
        pad_cols = Dp - D
        x_rc = jnp.pad(x, ((0, 0), (0, 0), (0, pad_cols)))
        pe_rc = jnp.pad(pe, ((0, 0), (0, pad_cols)))
        R, C = S, Dp

    itemsize = jnp.dtype(x.dtype).itemsize
    sublane = max(8, 32 // itemsize)          # 8 for f32, 16 for bf16, 32 for int8/fp8
    target_bytes, vmem_limit = _generation_tile_config()
    tr = max(sublane, (target_bytes // (C * itemsize)) // sublane * sublane)
    TR = int(min(R, tr))
    num_row_tiles = pl.cdiv(R, TR)

    keep_threshold = 0
    scale = 1.0
    if training and p > 0.0:
        keep_threshold = min(int(round(p * (1 << 32))), (1 << 32) - 1)
        scale = 1.0 / (1.0 - p)

    batch_inner = num_row_tiles > 1
    kernel = functools.partial(
        _pe_dropout_kernel,
        rows_total=R, block_rows=TR, cols=C,
        keep_threshold=keep_threshold, scale=scale,
        training=training, batch_inner=batch_inner)

    if batch_inner:
        # Batch is the fastest-varying axis: pe's block index is unchanged across
        # consecutive steps, so Pallas keeps the pe tile resident in VMEM and only
        # re-DMAs it when the row tile changes (up to ~33% fewer HBM bytes).
        grid = (num_row_tiles, B)
        x_spec = pl.BlockSpec((pl.Squeezed(), TR, C), lambda r, b, seed: (b, r, 0))
        pe_spec = pl.BlockSpec((TR, C), lambda r, b, seed: (r, 0))
        out_spec = pl.BlockSpec((pl.Squeezed(), TR, C), lambda r, b, seed: (b, r, 0))
        dims = ("parallel", "parallel")
    else:
        # Single row tile: 1-D grid over B so the megacore-sharded axis has >= 2
        # iterations on v7x; pe's block index is constant -> DMA'd only once.
        grid = (B,)
        x_spec = pl.BlockSpec((pl.Squeezed(), TR, C), lambda b, seed: (b, 0, 0))
        pe_spec = pl.BlockSpec((TR, C), lambda b, seed: (0, 0))
        out_spec = pl.BlockSpec((pl.Squeezed(), TR, C), lambda b, seed: (b, 0, 0))
        dims = ("parallel",)

    seed_arr = jnp.asarray([seed], dtype=jnp.int32)

    out = pl.pallas_call(
        kernel,
        out_shape=jax.ShapeDtypeStruct((B, R, C), x.dtype),
        grid_spec=pltpu.PrefetchScalarGridSpec(
            num_scalar_prefetch=1,
            grid=grid,
            in_specs=[x_spec, pe_spec],
            out_specs=out_spec,
        ),
        compiler_params=pltpu.CompilerParams(
            dimension_semantics=dims,
            vmem_limit_bytes=vmem_limit,
        ),
    )(seed_arr, x_rc, pe_rc)

    if pad_cols:
        return out[:, :, :D]
    return out.reshape(B, S, D)


if __name__ == "__main__":
    B, S, D = 2, 8, 32
    max_len = 5000
    dropout_p = 0.1

    key = jax.random.PRNGKey(0)
    x = jax.random.normal(key, (B, S, D), dtype=jnp.float32)

    pe_table = _build_pe_table(max_len, D)

    # Eval mode (PyTorch dropout is identity in eval): must match x + pe.
    out_eval = positional_encoding_forward(x, pe_table, p=dropout_p, training=False)
    out_eval = jax.block_until_ready(out_eval)
    ref = x + pe_table[None, :S, :]
    assert jnp.allclose(out_eval, ref, atol=1e-6, rtol=1e-6), "eval-mode mismatch"

    # Training mode (in-kernel stateless hash dropout; not bit-identical to torch RNG).
    out_train = positional_encoding_forward(x, pe_table, p=dropout_p,
                                            training=True, seed=42)
    out_train = jax.block_until_ready(out_train)
    assert out_train.shape == (B, S, D)
    # Surviving (non-dropped) entries equal ref / (1 - p).
    kept = out_train != 0.0
    assert jnp.allclose(jnp.where(kept, out_train, 0.0),
                        jnp.where(kept, ref / (1.0 - dropout_p), 0.0),
                        atol=1e-5, rtol=1e-5), "train-mode mismatch on kept entries"

    print("KERNEL_OK")
</pallas_src>

<mosaic_0001>
module attributes {stable_mosaic.version = 11 : i64} {
  func.func @_pe_dropout_kernel(%arg0: i32, %arg1: memref<1xi32, #tpu.memory_space<smem>>, %arg2: memref<1x2x128xf32, #tpu.memory_space<vmem>>, %arg3: memref<2x128xf32, #tpu.memory_space<vmem>>, %arg4: memref<1x2x128xf32, #tpu.memory_space<vmem>>) attributes {dimension_semantics = [#tpu.dimension_semantics<parallel>], iteration_bounds = array<i64: 2>, scalar_prefetch = 1 : i64, scratch_operands = 0 : i64, tpu.core_type = #tpu.core_type<tc>, window_params = [{transform_indices = @transform_0, window_bounds = array<i64: 1, 2, 128>}, {pipeline_mode = #tpu.pipeline_mode<synchronous>, transform_indices = @transform_1, window_bounds = array<i64: 2, 128>}, {transform_indices = @transform_2, window_bounds = array<i64: 1, 2, 128>}]} {
    %c0 = arith.constant 0 : index
    %c0_0 = arith.constant 0 : index
    %c0_1 = arith.constant 0 : index
    %0 = vector.load %arg2[%c0, %c0_0, %c0_1] : memref<1x2x128xf32, #tpu.memory_space<vmem>>, vector<1x2x128xf32>
    %1 = vector.shape_cast %0 : vector<1x2x128xf32> to vector<2x128xf32>
    %c0_2 = arith.constant 0 : index
    %c0_3 = arith.constant 0 : index
    %2 = vector.load %arg3[%c0_2, %c0_3] : memref<2x128xf32, #tpu.memory_space<vmem>>, vector<2x128xf32>
    %3 = arith.addf %1, %2 : vector<2x128xf32>
    %c0_4 = arith.constant 0 : index
    %c0_5 = arith.constant 0 : index
    %c0_6 = arith.constant 0 : index
    %4 = vector.load %arg4[%c0_4, %c0_5, %c0_6] : memref<1x2x128xf32, #tpu.memory_space<vmem>>, vector<1x2x128xf32>
    %5 = vector.shape_cast %4 : vector<1x2x128xf32> to vector<2x128xf32>
    %6 = vector.shape_cast %3 : vector<2x128xf32> to vector<1x2x128xf32>
    tpu.vector_store %arg4[%c0_4, %c0_5, %c0_6], %6 {strides = array<i32>} : memref<1x2x128xf32, #tpu.memory_space<vmem>>, vector<1x2x128xf32>,
    return
  }
  func.func @transform_0(%arg0: i32, %arg1: memref<1xi32, #tpu.memory_space<smem>>) -> (i32, i32, i32) {
    %c0_i32 = arith.constant 0 : i32
    %c0_i32_0 = arith.constant 0 : i32
    %c0_i32_1 = arith.constant 0 : i32
    return %arg0, %c0_i32, %c0_i32_0 : i32, i32, i32
  }
  func.func @transform_1(%arg0: i32, %arg1: memref<1xi32, #tpu.memory_space<smem>>) -> (i32, i32) {
    %c0_i32 = arith.constant 0 : i32
    %c0_i32_0 = arith.constant 0 : i32
    %c0_i32_1 = arith.constant 0 : i32
    return %c0_i32, %c0_i32_0 : i32, i32
  }
  func.func @transform_2(%arg0: i32, %arg1: memref<1xi32, #tpu.memory_space<smem>>) -> (i32, i32, i32) {
    %c0_i32 = arith.constant 0 : i32
    %c0_i32_0 = arith.constant 0 : i32
    %c0_i32_1 = arith.constant 0 : i32
    return %arg0, %c0_i32, %c0_i32_0 : i32, i32, i32
  }
}

</mosaic_0001>

<llo_original>
// kernel: tpu_custom_call.1
$region0: #{tpu_custom_call.1}
  #allocation0 [shape = 'u32[]', space=smem, size = 0x4, offset = 0x4, fixed_abs, tag = 'smem constant byte address 0x4 - core index']
  #allocation1 [shape = 'u32[72,128]{1,0:T(1,128)}', space=vmem, size = 0x9000, scoped, tag = 'internal scratch']
  #allocation2 [shape = 's32[1]{0}', space=sflag, size = 0x4, scoped, tag = 'scoped memory for tpu_custom_call.1']
  #allocation3 [shape = 's32[1]{0:T(128)S(6)}', space=smem, size = 0x200, scoped, tag = 'prefetched SMEM operand 0']
  %s0 = inlined_call_operand.<no memory space> [shape: s32[1], index: 0, kind: input, shape index: {}]
  %s1 = inlined_call_operand.hbm [shape: f32[2,2,128], index: 1, kind: input, shape index: {}]
  %s2 = inlined_call_operand.vmem [shape: f32[2,128], index: 2, kind: input, shape index: {}]
  %s3 = inlined_call_operand.hbm [shape: f32[2,2,128], index: 3, kind: output, shape index: {}]
  %s4 = sld [smem:[#allocation0]]
  $region45: #{tpu_custom_call.1} parent=0
    _
  %s6 = ssub.s32 1, %s4
  %s7 = scalar_select 0, %s6, %s4
  %8 = sst [smem:[#allocation3]] %s0
  $region1: #{tpu_custom_call.1} parent=0
    #allocation4 [shape = 'u8[2048]{0}', space=vmem, size = 0x800, scoped, tag = 'input window, operand 1']
    #allocation5 [shape = 's32[2]{0}', space=sflag, size = 0x8, scoped, tag = 'scoped memory for tpu_custom_call.1']
    #allocation6 [shape = 's32[2]{0}', space=sflag, size = 0x8, scoped, tag = 'scoped memory for tpu_custom_call.1']
    #allocation7 [shape = 'u8[2048]{0}', space=vmem, size = 0x800, scoped, tag = 'output window, operand 0']
    %9 = vsyncpa [#allocation5], 0
    %s10 = scalar_lea.sflag [#allocation5], 1
    %11 = vsyncpa %s10, 0
    %12 = vsyncpa [#allocation6], 0
    %s13 = scalar_lea.sflag [#allocation6], 1
    %14 = vsyncpa %s13, 0
    loop: start=0, step=1, limit=4
    $region2: #{tpu_custom_call.1} parent=1 // loop_pre_header
      _
    $region3: #{tpu_custom_call.1} parent=1 // loop_header
      %s16 = sphi 0, %s20
      %p17 = scmp.ge.s32.totalorder %s16, 4
      %s26 = sphi 0, %s28
      %s29 = sphi 0, %s26
      %s30 = sphi 0, %s29
      %s46 = sphi 0, %s30
      %s50 = sphi 0, %s50
      %s52 = sphi 0, %s50
      %s53 = sphi 0, %s52
      %s67 = sphi 0, %s53
      %s73 = sphi 0, %s75
      %s76 = sphi 0, %s73
      %s77 = sphi 0, %s76
      %s93 = sphi 0, %s77
    $region4: #{tpu_custom_call.1} parent=1 // loop_header_branch
      %19 = sbr.rel (%p17) target = $region8
    $region5: #{tpu_custom_call.1} parent=1 // loop_body
      %s21 = ssub.s32 %s16, 1
      %s22 = ssub.s32 %s16, 2
      %s23 = sadd.s32 %s16, 1
      %s24 = ssub.s32 %s16, %s23
      %p25 = scmp.eq.s32.totalorder %s24, 0
      %s27 = sadd.s32 %s26, 1
      %s28 = scalar_select %p25, %s26, %s27
      %p31 = pneg %p25
      %p32 = scmp.eq.s32.totalorder %s16, 1
      %p33 = por %p31, %p32
      %p34 = scmp.ne.s32.totalorder %s26, %s29
      %p35 = scmp.eq.s32.totalorder %s16, 0
      %p36 = por %p34, %p35
      %p37 = scmp.ne.s32.totalorder %s26, %s29
      %p38 = scmp.eq.s32.totalorder %s21, 1
      %p39 = por %p37, %p38
      %p40 = scmp.ne.s32.totalorder %s29, %s30
      %p41 = scmp.eq.s32.totalorder %s21, 0
      %p42 = por %p40, %p41
      %p43 = scmp.ne.s32.totalorder %s29, %s30
      %p44 = scmp.eq.s32.totalorder %s22, 1
      %p45 = por %p43, %p44
      %p47 = scmp.ne.s32.totalorder %s30, %s46
      %p48 = scmp.eq.s32.totalorder %s22, 0
      %p49 = por %p47, %p48
      %s51 = sadd.s32 %s50, 1
      %p54 = scmp.eq.s32.totalorder %s16, 1
      %p55 = scmp.ne.s32.totalorder %s50, %s52
      %p56 = scmp.eq.s32.totalorder %s16, 0
      %p57 = por %p55, %p56
      %p58 = scmp.ne.s32.totalorder %s50, %s52
      %p59 = scmp.eq.s32.totalorder %s21, 1
      %p60 = por %p58, %p59
      %p61 = scmp.ne.s32.totalorder %s52, %s53
      %p62 = scmp.eq.s32.totalorder %s21, 0
      %p63 = por %p61, %p62
      %p64 = scmp.ne.s32.totalorder %s52, %s53
      %p65 = scmp.eq.s32.totalorder %s22, 1
      %p66 = por %p64, %p65
      %p68 = scmp.ne.s32.totalorder %s53, %s67
      %p69 = scmp.eq.s32.totalorder %s22, 0
      %p70 = por %p68, %p69
      %s71 = ssub.s32 %s16, %s23
      %p72 = scmp.eq.s32.totalorder %s71, 0
      %s74 = sadd.s32 %s73, 1
      %s75 = scalar_select %p72, %s73, %s74
      %p78 = pneg %p72
      %p79 = scmp.eq.s32.totalorder %s16, 1
      %p80 = por %p78, %p79
      %p81 = scmp.ne.s32.totalorder %s73, %s76
      %p82 = scmp.eq.s32.totalorder %s16, 0
      %p83 = por %p81, %p82
      %p84 = scmp.ne.s32.totalorder %s73, %s76
      %p85 = scmp.eq.s32.totalorder %s21, 1
      %p86 = por %p84, %p85
      %p87 = scmp.ne.s32.totalorder %s76, %s77
      %p88 = scmp.eq.s32.totalorder %s21, 0
      %p89 = por %p87, %p88
      %p90 = scmp.ne.s32.totalorder %s76, %s77
      %p91 = scmp.eq.s32.totalorder %s22, 1
      %p92 = por %p90, %p91
      %p94 = scmp.ne.s32.totalorder %s77, %s93
      %p95 = scmp.eq.s32.totalorder %s22, 0
      %p96 = por %p94, %p95
      %p97 = scmp.le.s32.totalorder 1, %s16
      %p98 = scmp.lt.s32.totalorder %s16, 3
      %p99 = pnand %p97, %p98
      %p100 = pneg %p99
      // Predicated region
      $region9: #{tpu_custom_call.1} parent=5 // pred_check
        _
      $region10: #{tpu_custom_call.1} parent=5 // pred_check_branch
        %102 = sbr.rel (%p99) target = $region12
      $region11: #{tpu_custom_call.1} parent=5 // pred_region
        %s103 = ssub.s32 %s16, 1
        // Predicated region
        $region13: #{tpu_custom_call.1} parent=11 // pred_check
          %p104 = pneg %p63
        $region14: #{tpu_custom_call.1} parent=11 // pred_check_branch
          %106 = sbr.rel (%p104) target = $region16
        $region15: #{tpu_custom_call.1} parent=11 // pred_region
          _
        $region16: #{tpu_custom_call.1} parent=11 // pred_fallthru
          _
      $region12: #{tpu_custom_call.1} parent=5 // pred_fallthru
        _
      %p107 = scmp.lt.s32.totalorder %s16, 2
      // Predicated region
      $region17: #{tpu_custom_call.1} parent=5 // pred_check
        %p108 = pneg %p107
      $region18: #{tpu_custom_call.1} parent=5 // pred_check_branch
        %110 = sbr.rel (%p108) target = $region20
      $region19: #{tpu_custom_call.1} parent=5 // pred_region
        // Predicated region
        $region21: #{tpu_custom_call.1} parent=19 // pred_check
          %p111 = pneg %p36
        $region22: #{tpu_custom_call.1} parent=19 // pred_check_branch
          %113 = sbr.rel (%p111) target = $region24
        $region23: #{tpu_custom_call.1} parent=19 // pred_region
          %s114 = sand.u32 %s26, 1
          %s115 = scalar_lea.sflag [#allocation5], %s114
          %s116 = sand.u32 %s26, 1
          %s117 = smul.addr %s116, 2
          %s118 = scalar_lea.vmem [#allocation4], %s117
          %120 = vsyncadd %s115, 0
          %s121 = smul.addr %s16, 2
          %s122 = scalar_lea.hbm %s1, %s121
          %s124 = sshll.u32 %s122, 4
          %s125 = int_to_ptr.hbm [resolvable:$true] %s124
          %s126 = sshll.u32 %s118, 4
          %s127 = int_to_ptr.vmem [resolvable:$true] %s126
          %129 = dma.hbm_to_vmem [thread:$0]  %s125, 32, %s127, %s115
        $region24: #{tpu_custom_call.1} parent=19 // pred_fallthru
          _
      $region20: #{tpu_custom_call.1} parent=5 // pred_fallthru
        _
      %p130 = scmp.le.s32.totalorder 1, %s16
      %p131 = scmp.lt.s32.totalorder %s16, 3
      %p132 = pnand %p130, %p131
      %p133 = pneg %p132
      // Predicated region
      $region25: #{tpu_custom_call.1} parent=5 // pred_check
        _
      $region26: #{tpu_custom_call.1} parent=5 // pred_check_branch
        %135 = sbr.rel (%p132) target = $region28
      $region27: #{tpu_custom_call.1} parent=5 // pred_region
        %s136 = ssub.s32 %s16, 1
        %s137 = sand.u32 %s29, 1
        %s138 = scalar_lea.sflag [#allocation5], %s137
        %s139 = sand.u32 %s29, 1
        %s140 = smul.addr %s139, 2
        %s141 = scalar_lea.vmem [#allocation4], %s140
        // Predicated region
        $region29: #{tpu_custom_call.1} parent=27 // pred_check
          %p142 = pneg %p42
        $region30: #{tpu_custom_call.1} parent=27 // pred_check_branch
          %144 = sbr.rel (%p142) target = $region32
        $region31: #{tpu_custom_call.1} parent=27 // pred_region
          %146 = dma.done %s138, 32
        $region32: #{tpu_custom_call.1} parent=27 // pred_fallthru
          _
        %s147 = sand.u32 %s29, 1
        %s148 = scalar_lea.sflag [#allocation5], %s147
        %s149 = sand.u32 %s29, 1
        %s150 = smul.addr %s149, 2
        %s151 = scalar_lea.vmem [#allocation4], %s150
        %p152 = pneg %p42
        %p153 = pneg %p39
        %p154 = pneg %p63
        %p155 = pneg %p60
        %p156 = pneg %p89
        %p157 = pneg %p86
        %s158 = sand.u32 %s76, 1
        %s159 = scalar_lea.sflag [#allocation6], %s158
        %s160 = sand.u32 %s76, 1
        %s161 = smul.addr %s160, 2
        %s162 = scalar_lea.vmem [#allocation7], %s161
        %v163 = vld [vmem:[%s141] sm:$0x3]
        %v164 = vld [vmem:[%s2] sm:$0x3]
        %v165 = vadd.f32 %v163, %v164
        %166 = vst [vmem:[%s162] sm:$0x3] %v165
        %s167 = sand.u32 %s76, 1
        %s168 = scalar_lea.sflag [#allocation6], %s167
        %s169 = sand.u32 %s76, 1
        %s170 = smul.addr %s169, 2
        %s171 = scalar_lea.vmem [#allocation7], %s170
        // Predicated region
        $region33: #{tpu_custom_call.1} parent=27 // pred_check
          %p172 = pneg %p86
        $region34: #{tpu_custom_call.1} parent=27 // pred_check_branch
          %174 = sbr.rel (%p172) target = $region36
        $region35: #{tpu_custom_call.1} parent=27 // pred_region
          %176 = vsyncadd %s168, 0
          %s177 = smul.addr %s21, 2
          %s178 = scalar_lea.hbm %s3, %s177
          %s180 = sshll.u32 %s171, 4
          %s181 = int_to_ptr.vmem [resolvable:$true] %s180
          %s182 = sshll.u32 %s178, 4
          %s183 = int_to_ptr.hbm [resolvable:$true] %s182
          %185 = dma.vmem_to_hbm [thread:$0]  %s181, 32, %s183, %s168
        $region36: #{tpu_custom_call.1} parent=27 // pred_fallthru
          _
      $region28: #{tpu_custom_call.1} parent=5 // pred_fallthru
        _
      %p186 = scmp.le.s32.totalorder 2, %s16
      // Predicated region
      $region37: #{tpu_custom_call.1} parent=5 // pred_check
        %p187 = pneg %p186
      $region38: #{tpu_custom_call.1} parent=5 // pred_check_branch
        %189 = sbr.rel (%p187) target = $region40
      $region39: #{tpu_custom_call.1} parent=5 // pred_region
        %s190 = ssub.s32 %s16, 2
        // Predicated region
        $region41: #{tpu_custom_call.1} parent=39 // pred_check
          %p191 = pneg %p92
        $region42: #{tpu_custom_call.1} parent=39 // pred_check_branch
          %193 = sbr.rel (%p191) target = $region44
        $region43: #{tpu_custom_call.1} parent=39 // pred_region
          %s194 = sand.u32 %s77, 1
          %s195 = scalar_lea.sflag [#allocation6], %s194
          %s196 = sand.u32 %s77, 1
          %s197 = smul.addr %s196, 2
          %s198 = scalar_lea.vmem [#allocation7], %s197
          %200 = dma.done %s195, 32
        $region44: #{tpu_custom_call.1} parent=39 // pred_fallthru
          _
      $region40: #{tpu_custom_call.1} parent=5 // pred_fallthru
        _
    $region6: #{tpu_custom_call.1} parent=1 // loop_footer
      %s20 = sadd.s32 1, %s16
    $region7: #{tpu_custom_call.1} parent=1 // loop_footer_branch
      %15 = sbr.rel target = $region3
    $region8: #{tpu_custom_call.1} parent=1 // loop_exit
      _
    %201 = vsyncpa [#allocation5], 1
    %s202 = scalar_lea.sflag [#allocation5], 1
    %203 = vsyncpa %s202, 1
    %204 = vsyncpa [#allocation6], 1
    %s205 = scalar_lea.sflag [#allocation6], 1
    %206 = vsyncpa %s205, 1

</llo_original>
